<compile_context>
chip_gen: v7x
topology: tpu7x:2x2x1
jax: 0.10.0
libtpu: 0.0.40
codegen_flags: <defaults>
</compile_context>

<pallas_src>
import jax
import jax.numpy as jnp
from jax import lax
from jax.experimental import pallas as pl
from jax.experimental.pallas import tpu as pltpu

_LANE = 128


def _round_up(x, m):
    return ((x + m - 1) // m) * m


def _choose_tile(B, cap):
    """Batch tile: multiple of 128 lanes, big enough to amortize the ~0.35us
    per-grid-step overhead, small enough for double-buffered VMEM, and split
    into >=2 steps at moderate batch so v7x's two TensorCores both get work."""
    cap = max(_LANE, _round_up(cap, _LANE))
    b_aligned = _round_up(B, _LANE)
    if b_aligned >= 2 * cap:            # large batch: many steps of `cap`
        return cap
    min_split = 8192                    # ~1 MiB of streamed x per step (f32)
    if b_aligned >= 2 * min_split:      # moderate batch: exactly two steps
        return _round_up((b_aligned + 1) // 2, _LANE)
    return min(cap, b_aligned)          # small batch: single step


def sum_mixture_kernel(x_ref, a_ref, c_ref, o_ref):
    # x_ref: (TB, N) f32  -- input batch block, natural layout (batch on sublanes)
    # a_ref: (M, N)  bf16 -- stacked sub-model weights (resident)
    # c_ref: (M, 1)  f32  -- bias + log-softmax mixture weight (folded on host)
    # o_ref: (1, TB) f32  -- lane-dense output block (batch on lanes)
    x_bf = x_ref[...].astype(jnp.bfloat16)               # in-kernel VPU cast
    # NT contraction on N: (M, N) . (TB, N)^T -> (M, TB); batch lands on lanes
    # without any host-side or in-kernel transpose of the big x block.
    z = lax.dot_general(
        a_ref[...], x_bf,
        dimension_numbers=(((1,), (1,)), ((), ())),
        preferred_element_type=jnp.float32) + c_ref[...]  # (M, TB)
    # Numerically-stable logsumexp over the model axis (cheap sublane reduce).
    z_max = jnp.max(z, axis=0, keepdims=True)              # (1, TB)
    y = z_max + jnp.log(jnp.sum(jnp.exp(z - z_max), axis=0, keepdims=True))
    # TODO(synk): torch module has a runtime NaN check + pdb breakpoint; not
    # representable in a TPU kernel (debug-only code path), omitted.
    o_ref[...] = y.astype(o_ref.dtype)


def sum_forward(x, A, b, W, *, tb=16384):
    """x: (B, N) f32, A: (M, N) f32 sub-model weights, b: (M,), W: (M-1,)."""
    x = jnp.asarray(x, jnp.float32)
    B, N = x.shape
    M = A.shape[0]

    # Fold mixture log-weights into the bias (tiny, one-time host work).
    w_full = jnp.concatenate(
        [jnp.asarray(W, jnp.float32), jnp.zeros((1,), jnp.float32)], -1)
    logw = jax.nn.log_softmax(w_full, axis=0)
    c = (jnp.asarray(b, jnp.float32) + logw).reshape(M, 1)
    a_bf = jnp.asarray(A, jnp.bfloat16)     # 4x32, resident in VMEM

    tb = _choose_tile(B, tb)
    grid = pl.cdiv(B, tb)
    b_out = grid * tb                        # output fully covered by full blocks

    out = pl.pallas_call(
        sum_mixture_kernel,
        out_shape=jax.ShapeDtypeStruct((1, b_out), jnp.float32),
        grid_spec=pltpu.PrefetchScalarGridSpec(
            num_scalar_prefetch=0,
            grid=(grid,),
            in_specs=[
                pl.BlockSpec((tb, N), lambda i: (i, 0)),   # streamed x tiles
                pl.BlockSpec((M, N), lambda i: (0, 0)),    # resident weights
                pl.BlockSpec((M, 1), lambda i: (0, 0)),    # resident bias+logw
            ],
            out_specs=pl.BlockSpec((1, tb), lambda i: (0, i)),
        ),
        compiler_params=pltpu.CompilerParams(
            dimension_semantics=("parallel",),
            vmem_limit_bytes=32 * 1024 * 1024),
    )(x, a_bf, c)
    return out[0, :B]


def ref_forward(x, A, b, W):
    """Pure-JAX reference mirroring Sum.forward with linear sub-models.

    Operands are rounded to bf16 (matching the kernel's bf16 MXU matmul) but
    the matmul/logsumexp run in f32, so the comparison tolerance stays tight.
    """
    xb = x.astype(jnp.bfloat16).astype(jnp.float32)
    Ab = A.astype(jnp.bfloat16).astype(jnp.float32)
    ys = xb @ Ab.T + b[None, :]                                   # (B, M)
    w_full = jnp.concatenate([W, jnp.zeros((1,), W.dtype)], -1)
    logw = jax.nn.log_softmax(w_full, axis=0)
    return jax.scipy.special.logsumexp(logw[None, :] + ys, axis=-1)  # (B,)


if __name__ == "__main__":
    # Small shapes consistent with the module: n = feature dim, m = #models.
    B, N, M = 8, 32, 4

    key = jax.random.PRNGKey(0)
    kx, ka, kb, kw = jax.random.split(key, 4)
    x = jax.random.normal(kx, (B, N), dtype=jnp.float32)
    A = jax.random.normal(ka, (M, N), dtype=jnp.float32) * 0.1   # sub-model weights
    b = jax.random.normal(kb, (M,), dtype=jnp.float32) * 0.1     # sub-model biases
    W = jax.random.normal(kw, (M - 1,), dtype=jnp.float32)       # Sum.W parameter

    y = jax.block_until_ready(sum_forward(x, A, b, W))
    y_ref = ref_forward(x, A, b, W)
    assert y.shape == (B,)
    assert jnp.allclose(y, y_ref, atol=1e-4, rtol=1e-3), (y, y_ref)

    # Multi-step grid with a partial final block (no host-side padding of x).
    B2 = 1300
    x2 = jax.random.normal(kx, (B2, N), dtype=jnp.float32)
    y2 = jax.block_until_ready(sum_forward(x2, A, b, W, tb=512))
    y2_ref = ref_forward(x2, A, b, W)
    assert y2.shape == (B2,)
    assert jnp.allclose(y2, y2_ref, atol=1e-4, rtol=1e-3)

    # Moderate batch: exercises the two-step split (v7x dual-TensorCore path).
    B3 = 20000
    x3 = jax.random.normal(kx, (B3, N), dtype=jnp.float32)
    y3 = jax.block_until_ready(sum_forward(x3, A, b, W))
    y3_ref = ref_forward(x3, A, b, W)
    assert y3.shape == (B3,)
    assert jnp.allclose(y3, y3_ref, atol=1e-4, rtol=1e-3)

    print("KERNEL_OK")
</pallas_src>

<mosaic_0001>
module attributes {stable_mosaic.version = 11 : i64} {
  func.func @sum_mixture_kernel(%arg0: i32, %arg1: memref<128x32xf32, #tpu.memory_space<vmem>>, %arg2: memref<4x32xbf16, #tpu.memory_space<vmem>>, %arg3: memref<4x1xf32, #tpu.memory_space<vmem>>, %arg4: memref<1x128xf32, #tpu.memory_space<vmem>>) attributes {dimension_semantics = [#tpu.dimension_semantics<parallel>], iteration_bounds = array<i64: 1>, scalar_prefetch = 0 : i64, scratch_operands = 0 : i64, tpu.core_type = #tpu.core_type<tc>, window_params = [{transform_indices = @transform_0, window_bounds = array<i64: 128, 32>}, {pipeline_mode = #tpu.pipeline_mode<synchronous>, transform_indices = @transform_1, window_bounds = array<i64: 4, 32>}, {pipeline_mode = #tpu.pipeline_mode<synchronous>, transform_indices = @transform_2, window_bounds = array<i64: 4, 1>}, {transform_indices = @transform_3, window_bounds = array<i64: 1, 128>}]} {
    %c0 = arith.constant 0 : index
    %c0_0 = arith.constant 0 : index
    %0 = vector.load %arg1[%c0, %c0_0] : memref<128x32xf32, #tpu.memory_space<vmem>>, vector<128x32xf32>
    %1 = arith.truncf %0 : vector<128x32xf32> to vector<128x32xbf16>
    %c0_1 = arith.constant 0 : index
    %c0_2 = arith.constant 0 : index
    %2 = vector.load %arg2[%c0_1, %c0_2] : memref<4x32xbf16, #tpu.memory_space<vmem>>, vector<4x32xbf16>
    %cst = arith.constant dense<0.000000e+00> : vector<4x128xf32>
    %3 = tpu.matmul %2, %1, %cst {dimension_numbers = #tpu.dot_dimension_numbers<[1], [1], [0], [0], [0, 0, 1, 0], [], []>} : vector<4x32xbf16>, vector<128x32xbf16>, vector<4x128xf32> -> vector<4x128xf32>
    %c0_3 = arith.constant 0 : index
    %c0_4 = arith.constant 0 : index
    %4 = vector.load %arg3[%c0_3, %c0_4] : memref<4x1xf32, #tpu.memory_space<vmem>>, vector<4x1xf32>
    %5 = vector.broadcast %4 : vector<4x1xf32> to vector<4x128xf32>
    %6 = arith.addf %3, %5 : vector<4x128xf32>
    %cst_5 = arith.constant dense<0xFF800000> : vector<128xf32>
    %7 = vector.multi_reduction <maximumf>, %6, %cst_5 [0] : vector<4x128xf32> to vector<128xf32>
    %8 = vector.shape_cast %7 : vector<128xf32> to vector<1x128xf32>
    %9 = vector.broadcast %8 : vector<1x128xf32> to vector<4x128xf32>
    %10 = arith.subf %6, %9 : vector<4x128xf32>
    %11 = math.exp %10 : vector<4x128xf32>
    %cst_6 = arith.constant dense<0.000000e+00> : vector<128xf32>
    %12 = vector.multi_reduction <add>, %11, %cst_6 [0] : vector<4x128xf32> to vector<128xf32>
    %13 = vector.shape_cast %12 : vector<128xf32> to vector<1x128xf32>
    %14 = math.log %13 : vector<1x128xf32>
    %15 = arith.addf %8, %14 : vector<1x128xf32>
    %c0_7 = arith.constant 0 : index
    %c0_8 = arith.constant 0 : index
    %16 = vector.load %arg4[%c0_7, %c0_8] : memref<1x128xf32, #tpu.memory_space<vmem>>, vector<1x128xf32>
    tpu.vector_store %arg4[%c0_7, %c0_8], %15 {strides = array<i32>} : memref<1x128xf32, #tpu.memory_space<vmem>>, vector<1x128xf32>,
    return
  }
  func.func @transform_0(%arg0: i32) -> (i32, i32) {
    %c0_i32 = arith.constant 0 : i32
    %c0_i32_0 = arith.constant 0 : i32
    return %arg0, %c0_i32 : i32, i32
  }
  func.func @transform_1(%arg0: i32) -> (i32, i32) {
    %c0_i32 = arith.constant 0 : i32
    %c0_i32_0 = arith.constant 0 : i32
    %c0_i32_1 = arith.constant 0 : i32
    return %c0_i32, %c0_i32_0 : i32, i32
  }
  func.func @transform_2(%arg0: i32) -> (i32, i32) {
    %c0_i32 = arith.constant 0 : i32
    %c0_i32_0 = arith.constant 0 : i32
    %c0_i32_1 = arith.constant 0 : i32
    return %c0_i32, %c0_i32_0 : i32, i32
  }
  func.func @transform_3(%arg0: i32) -> (i32, i32) {
    %c0_i32 = arith.constant 0 : i32
    %c0_i32_0 = arith.constant 0 : i32
    return %c0_i32, %arg0 : i32, i32
  }
}

</mosaic_0001>

<llo_original>
// kernel: tpu_custom_call.1
$region0: #{tpu_custom_call.1}
  #allocation0 [shape = 'u32[]', space=smem, size = 0x4, offset = 0x4, fixed_abs, tag = 'smem constant byte address 0x4 - core index']
  #allocation1 [shape = 'u32[144,128]{1,0:T(1,128)}', space=vmem, size = 0x12000, scoped, tag = 'internal scratch']
  %s0 = inlined_call_operand.hbm [shape: f32[8,32], index: 0, kind: input, shape index: {}]
  %s1 = inlined_call_operand.vmem [shape: bf16[4,32], index: 1, kind: input, shape index: {}]
  %s2 = inlined_call_operand.vmem [shape: f32[4,1], index: 2, kind: input, shape index: {}]
  %s3 = inlined_call_operand.hbm [shape: f32[1,128], index: 3, kind: output, shape index: {}]
  %s4 = sld [smem:[#allocation0]]
  $region26: #{tpu_custom_call.1} parent=0
    _
  %s6 = ssub.s32 1, %s4
  %s7 = scalar_select 0, %s6, %s4
  $region1: #{tpu_custom_call.1} parent=0
    #allocation2 [shape = 'u8[65536]{0}', space=vmem, size = 0x10000, scoped, tag = 'input window, operand 0, single buffered']
    #allocation3 [shape = 's32[1]{0}', space=sflag, size = 0x4, scoped, tag = 'scoped memory for tpu_custom_call.1']
    #allocation4 [shape = 's32[1]{0}', space=sflag, size = 0x4, scoped, tag = 'scoped memory for tpu_custom_call.1']
    #allocation5 [shape = 'u8[512]{0}', space=vmem, size = 0x400, scoped, tag = 'output window, operand 0, single buffered']
    %8 = vsyncpa [#allocation3], 0
    %9 = vsyncpa [#allocation4], 0
    // Predicated region
    $region2: #{tpu_custom_call.1} parent=1 // pred_check
      _
    $region3: #{tpu_custom_call.1} parent=1 // pred_check_branch
      %11 = sbr.rel (0) target = $region5
    $region4: #{tpu_custom_call.1} parent=1 // pred_region
      %s13 = ssub.s32 2048, 128
      %14 = vsyncadd [#allocation3], %s13
      %s15 = sshll.u32 [#allocation2], 4
      %s16 = int_to_ptr.vmem [resolvable:$true] %s15
      %21 = dma.hbm_to_vmem [thread:$0]  %s0, 128, %s16, [#allocation3], 128, 128, 8
    $region5: #{tpu_custom_call.1} parent=1 // pred_fallthru
      _
    // Predicated region
    $region6: #{tpu_custom_call.1} parent=1 // pred_check
      _
    $region7: #{tpu_custom_call.1} parent=1 // pred_check_branch
      %23 = sbr.rel (0) target = $region9
    $region8: #{tpu_custom_call.1} parent=1 // pred_region
      _
    $region9: #{tpu_custom_call.1} parent=1 // pred_fallthru
      _
    // Predicated region
    $region10: #{tpu_custom_call.1} parent=1 // pred_check
      _
    $region11: #{tpu_custom_call.1} parent=1 // pred_check_branch
      %25 = sbr.rel (0) target = $region13
    $region12: #{tpu_custom_call.1} parent=1 // pred_region
      _
    $region13: #{tpu_custom_call.1} parent=1 // pred_fallthru
      _
    // Predicated region
    $region14: #{tpu_custom_call.1} parent=1 // pred_check
      _
    $region15: #{tpu_custom_call.1} parent=1 // pred_check_branch
      %27 = sbr.rel (0) target = $region17
    $region16: #{tpu_custom_call.1} parent=1 // pred_region
      %28 = dma.done [#allocation3], 2048
    $region17: #{tpu_custom_call.1} parent=1 // pred_fallthru
      _
    %v30 = vld [vmem:[#allocation2] sm:$0xff]
    %v31 = vld [vmem:[#allocation2 + $0x8] sm:$0xff]
    %v32 = vld [vmem:[#allocation2 + $0x10] sm:$0xff]
    %v33 = vld [vmem:[#allocation2 + $0x18] sm:$0xff]
    %v34 = vld [vmem:[#allocation2 + $0x20] sm:$0xff]
    %v35 = vld [vmem:[#allocation2 + $0x28] sm:$0xff]
    %v36 = vld [vmem:[#allocation2 + $0x30] sm:$0xff]
    %v37 = vld [vmem:[#allocation2 + $0x38] sm:$0xff]
    %v38 = vld [vmem:[#allocation2 + $0x40] sm:$0xff]
    %v39 = vld [vmem:[#allocation2 + $0x48] sm:$0xff]
    %v40 = vld [vmem:[#allocation2 + $0x50] sm:$0xff]
    %v41 = vld [vmem:[#allocation2 + $0x58] sm:$0xff]
    %v42 = vld [vmem:[#allocation2 + $0x60] sm:$0xff]
    %v43 = vld [vmem:[#allocation2 + $0x68] sm:$0xff]
    %v44 = vld [vmem:[#allocation2 + $0x70] sm:$0xff]
    %v45 = vld [vmem:[#allocation2 + $0x78] sm:$0xff]
    %v46 = vpack.c.bf16 %v31, %v30
    %v47 = vpack.c.bf16 %v33, %v32
    %v48 = vpack.c.bf16 %v35, %v34
    %v49 = vpack.c.bf16 %v37, %v36
    %v50 = vpack.c.bf16 %v39, %v38
    %v51 = vpack.c.bf16 %v41, %v40
    %v52 = vpack.c.bf16 %v43, %v42
    %v53 = vpack.c.bf16 %v45, %v44
    %v54 = vld [vmem:[%s1] sm:$0x3]
    %v55 = vld [vmem:[%s2] sm:$0xf]
    %57 = vset.pattern.permute.xlu0 0
    %58 = vperm.xlu0 %57, %v55
    %v59 = vpop.permute.xlu0 %58
    %vm61 = vcmask 261120
    %v63 = vsel %vm61, %v54, 0
    %v66 = vsel %vm61, %v46, 0
    %v69 = vsel %vm61, %v47, 0
    %v72 = vsel %vm61, %v48, 0
    %v75 = vsel %vm61, %v49, 0
    %v78 = vsel %vm61, %v50, 0
    %v81 = vsel %vm61, %v51, 0
    %v84 = vsel %vm61, %v52, 0
    %v87 = vsel %vm61, %v53, 0
    %89 = vmatprep.subr.bf16.mxu0 0
    %90 = vmatpush1.bf16.xpose.msra.mxu0 %v66
    %91 = vmatprep.subr.bf16.mxu0 0
    %92 = vmatpush1.bf16.xpose.msra.mxu0 %v69
    %93 = vmatprep.subr.bf16.mxu0 0
    %94 = vmatpush1.bf16.xpose.msra.mxu0 %v72
    %95 = vmatprep.subr.bf16.mxu0 0
    %96 = vmatpush1.bf16.xpose.msra.mxu0 %v75
    %97 = vmatprep.subr.bf16.mxu0 0
    %98 = vmatpush1.bf16.xpose.msra.mxu0 %v78
    %99 = vmatprep.subr.bf16.mxu0 0
    %100 = vmatpush1.bf16.xpose.msra.mxu0 %v81
    %101 = vmatprep.subr.bf16.mxu0 0
    %102 = vmatpush1.bf16.xpose.msra.mxu0 %v84
    %103 = vmatprep.subr.bf16.mxu0 0
    %104 = vmatpush1.bf16.xpose.msra.mxu0 %v87
    %105 = vmatprep.subr.bf16.mxu0 0
    %106 = vmatpush1.bf16.xpose.msra.mxu0 0
    %107 = vmatprep.subr.bf16.mxu0 0
    %108 = vmatpush1.bf16.xpose.msra.mxu0 0
    %109 = vmatprep.subr.bf16.mxu0 0
    %110 = vmatpush1.bf16.xpose.msra.mxu0 0
    %111 = vmatprep.subr.bf16.mxu0 0
    %112 = vmatpush1.bf16.xpose.msra.mxu0 0
    %113 = vmatprep.subr.bf16.mxu0 0
    %114 = vmatpush1.bf16.xpose.msra.mxu0 0
    %115 = vmatprep.subr.bf16.mxu0 0
    %116 = vmatpush1.bf16.xpose.msra.mxu0 0
    %117 = vmatprep.subr.bf16.mxu0 0
    %118 = vmatpush1.bf16.xpose.msra.mxu0 0
    %119 = vmatprep.subr.bf16.mxu0 0
    %120 = vmatpush1.bf16.xpose.msra.mxu0 0
    %121 = vmatprep.mubr.bf16.mxu0 0
    %122 = vmatmul.mubr.bf16.gmra.mrb[0].mxu0 %v63
    %v123 = vpop.f32.mrb[0].mxu0
    %v124 = vadd.f32 %v59, %v123
    %v125 = vpop.f32.mrb[0].mxu0
    %v126 = vpop.f32.mrb[0].mxu0
    %v127 = vpop.f32.mrb[0].mxu0
    %128 = vdwg.mxu0
    %vm129 = vcmask 1043456
    %v130 = vsel %vm129, %v124, -inf
    %v131 = vrot.slane %v130, 4
    %v132 = vmax.f32 %v130, %v131
    %v133 = vrot.slane %v132, 2
    %v134 = vmax.f32 %v132, %v133
    %v135 = vrot.slane %v134, 1
    %v136 = vmax.f32 %v134, %v135
    %v137 = vsub.f32 %v124, %v136
    %v138 = vmul.f32 %v137, 1.442695
    %v139 = vpow.pop %v138
    %v140 = vsel %vm129, %v139, 0.0
    %v141 = vrot.slane %v140, 4
    %v142 = vadd.f32 %v140, %v141
    %v143 = vrot.slane %v142, 2
    %v144 = vadd.f32 %v142, %v143
    %v145 = vrot.slane %v144, 1
    %v146 = vadd.f32 %v144, %v145
    %v147 = vlog2.pop %v146
    %v148 = vmul.f32 %v147, 0.6931472
    %v149 = vadd.f32 %v136, %v148
    %150 = vst [vmem:[#allocation5] sm:$0x1] %v149
    // Predicated region
    $region18: #{tpu_custom_call.1} parent=1 // pred_check
      _
    $region19: #{tpu_custom_call.1} parent=1 // pred_check_branch
      %152 = sbr.rel (0) target = $region21
    $region20: #{tpu_custom_call.1} parent=1 // pred_region
      %s154 = ssub.s32 16, 16
      %155 = vsyncadd [#allocation4], %s154
      %s157 = sshll.u32 [#allocation5], 4
      %s158 = int_to_ptr.vmem [resolvable:$true] %s157
      %160 = dma.vmem_to_hbm [thread:$0]  %s158, 16, %s3, [#allocation4]
    $region21: #{tpu_custom_call.1} parent=1 // pred_fallthru
      _
    // Predicated region
    $region22: #{tpu_custom_call.1} parent=1 // pred_check
      _
    $region23: #{tpu_custom_call.1} parent=1 // pred_check_branch
      %162 = sbr.rel (0) target = $region25
    $region24: #{tpu_custom_call.1} parent=1 // pred_region
      %163 = dma.done [#allocation4], 16
    $region25: #{tpu_custom_call.1} parent=1 // pred_fallthru
      _
    %164 = vsyncpa [#allocation3], 1
    %165 = vsyncpa [#allocation4], 1

</llo_original>
